<compile_context>
chip_gen: v6e
topology: v6e:2x2x1
jax: 0.10.0
libtpu: 0.0.40
codegen_flags: <defaults>
</compile_context>

<pallas_src>
import functools

import jax
import jax.numpy as jnp
from jax.experimental import pallas as pl
from jax.experimental.pallas import tpu as pltpu

_LANES = 128
_SUBLANES = 8
_MAX_TILE_ROWS = 8192                 # 8192 x 128 x 4B = 4 MiB per f32 input block
_VMEM_LIMIT_BYTES = 48 * 1024 * 1024  # buffers (16 MiB) + elementwise temporaries


def _round_up(a, b):
    return ((a + b - 1) // b) * b


def _min_rows_for(dtype):
    # Sub-32-bit dtypes pack along sublanes: bf16/f16 min tile (16,128),
    # int8/fp8 (32,128); f32 stays at (8,128).
    return {4: 8, 2: 16, 1: 32}.get(jnp.dtype(dtype).itemsize, 8)


def _num_tensorcores():
    # Among the target generations only v7x has 2 TensorCores per device.
    try:
        kind = jax.devices()[0].device_kind.lower()
    except Exception:
        return 1
    return 2 if ("v7" in kind or "7x" in kind) else 1


def _l1_partial_kernel(x_ref, y_ref, o_ref, *, tile_rows, steps_per_split,
                       valid_rows, need_mask):
    """Accumulate sum(|x - y|) of one split into its (8,128) output block."""
    p = pl.program_id(0)   # split axis ("parallel")
    i = pl.program_id(1)   # reduction axis ("arbitrary")

    @pl.when(i == 0)
    def _():
        o_ref[...] = jnp.zeros_like(o_ref)

    d = jnp.abs(x_ref[...].astype(jnp.float32) - y_ref[...].astype(jnp.float32))

    if need_mask:
        # Ragged last block / split-imbalance steps: zero rows past the valid
        # range. `valid_rows` is a trace-time constant (shape-derived), so no
        # scalar prefetch is needed. Garbage (even NaN) in the padded region
        # is discarded by the select.
        step = p * steps_per_split + i
        row_ids = step * tile_rows + jax.lax.broadcasted_iota(jnp.int32, d.shape, 0)
        d = jnp.where(row_ids < valid_rows, d, 0.0)

    # Fold rows onto the (8,128) accumulator: pure VPU vreg adds, no per-step
    # cross-lane (XLU) reduction and no scalar RMW.
    o_ref[...] += d.reshape(-1, _SUBLANES, _LANES).sum(axis=0)


def estimator_loss(x, y):
    """sum(|x - y|) / x.shape[0], matching the PyTorch EstimatorLoss."""
    assert x.shape == y.shape, "x and y must have the same shape"
    batch = x.shape[0]

    # Flatten only — reshape of a contiguous array is free (no HBM copy, no cast).
    xf = jnp.ravel(x)
    yf = jnp.ravel(y)
    n = xf.shape[0]

    rows = n // _LANES
    rem = n - rows * _LANES

    tail = None
    if rem:
        # Sub-128-element ragged tail: tiny, computed in plain JAX.
        tail = jnp.sum(jnp.abs(xf[rows * _LANES:].astype(jnp.float32)
                               - yf[rows * _LANES:].astype(jnp.float32)))
        # TODO(synk): this prefix slice still materializes a copy of the inputs
        # when n % 128 != 0; a fully copy-free path needs 1-D blocks plus an
        # in-kernel lane mask (rare for NN tensors, so not done here).
        xf = xf[: rows * _LANES]
        yf = yf[: rows * _LANES]

    min_rows = _min_rows_for(x.dtype)
    if rows < min_rows:
        # Degenerate tiny input: a kernel launch is pure overhead.
        total = jnp.float32(0.0) if tail is None else tail
        if rows:
            total = total + jnp.sum(jnp.abs(xf.astype(jnp.float32)
                                            - yf.astype(jnp.float32)))
        return (total / jnp.float32(batch)).astype(jnp.float32)

    x2 = xf.reshape(rows, _LANES)
    y2 = yf.reshape(rows, _LANES)

    # Largest lane-dense tile that (a) never exceeds the array (only standard
    # partial boundary blocks) and (b) keeps double-buffered VMEM use inside
    # the scoped limit.
    tile_rows = min(_MAX_TILE_ROWS, max(min_rows, (rows // min_rows) * min_rows))
    num_steps = pl.cdiv(rows, tile_rows)

    # Shard the reduction across TensorCores only where there are 2 of them
    # (v7x); on 1-TC v5e/v6e the split is pure pipeline-ramp overhead.
    num_splits = 2 if (_num_tensorcores() >= 2 and num_steps >= 2) else 1
    steps_per_split = pl.cdiv(num_steps, num_splits)

    # In-kernel masking replaces jnp.pad: no extra HBM traffic for ragged sizes.
    need_mask = (rows % tile_rows != 0) or (num_splits * steps_per_split != num_steps)

    last_block = num_steps - 1
    if num_splits * steps_per_split != num_steps:
        # Odd step count split across 2 cores: clamp the block index. The
        # repeated step is fully masked in-kernel and its DMA is skipped
        # (block index unchanged from the previous step).
        in_map = lambda p, i: (jnp.minimum(p * steps_per_split + i, last_block), 0)
    else:
        in_map = lambda p, i: (p * steps_per_split + i, 0)

    kernel = functools.partial(
        _l1_partial_kernel,
        tile_rows=tile_rows,
        steps_per_split=steps_per_split,
        valid_rows=rows,
        need_mask=need_mask,
    )

    itemsize = jnp.dtype(x.dtype).itemsize
    cost = pl.CostEstimate(
        flops=3 * rows * _LANES,
        transcendentals=0,
        bytes_accessed=2 * rows * _LANES * itemsize
        + num_splits * _SUBLANES * _LANES * 4,
    )

    partials = pl.pallas_call(
        kernel,
        out_shape=jax.ShapeDtypeStruct((num_splits, _SUBLANES, _LANES), jnp.float32),
        grid=(num_splits, steps_per_split),
        in_specs=[
            pl.BlockSpec((tile_rows, _LANES), in_map),
            pl.BlockSpec((tile_rows, _LANES), in_map),
        ],
        # Output block index is constant along the reduction axis -> it stays
        # VMEM-resident and doubles as the accumulator (no separate scratch).
        out_specs=pl.BlockSpec((None, _SUBLANES, _LANES), lambda p, i: (p, 0, 0)),
        compiler_params=pltpu.CompilerParams(
            # If xprof on v7x shows the leading axis not sharded across both
            # TensorCores, switch it to pltpu.CORE_PARALLEL.
            dimension_semantics=("parallel", "arbitrary"),
            vmem_limit_bytes=_VMEM_LIMIT_BYTES,
        ),
        cost_estimate=cost,
    )(x2, y2)

    # Single cheap cross-lane reduction outside the kernel.
    total = jnp.sum(partials)
    if rem:
        total = total + tail
    return (total / jnp.float32(batch)).astype(jnp.float32)


if __name__ == "__main__":
    key = jax.random.PRNGKey(0)
    kx, ky = jax.random.split(key)
    # Small NCHW inputs, consistent with a conv-style estimator output.
    x = jax.random.normal(kx, (2, 4, 16, 16), dtype=jnp.float32)
    y = jax.random.normal(ky, (2, 4, 16, 16), dtype=jnp.float32)

    out = estimator_loss(x, y)
    out = jax.block_until_ready(out)

    # Pure-JAX reference check.
    ref = jnp.sum(jnp.abs(x - y)) / x.shape[0]
    assert jnp.allclose(out, ref, rtol=1e-5, atol=1e-5), (out, ref)

    print("KERNEL_OK")
</pallas_src>

<mosaic_0001>
module attributes {stable_mosaic.version = 11 : i64} {
  func.func @_l1_partial_kernel(%arg0: i32, %arg1: i32, %arg2: memref<16x128xf32, #tpu.memory_space<vmem>>, %arg3: memref<16x128xf32, #tpu.memory_space<vmem>>, %arg4: memref<1x8x128xf32, #tpu.memory_space<vmem>>) attributes {dimension_semantics = [#tpu.dimension_semantics<parallel>, #tpu.dimension_semantics<arbitrary>], iteration_bounds = array<i64: 1, 1>, scalar_prefetch = 0 : i64, scratch_operands = 0 : i64, tpu.core_type = #tpu.core_type<tc>, window_params = [{transform_indices = @transform_0, window_bounds = array<i64: 16, 128>}, {transform_indices = @transform_1, window_bounds = array<i64: 16, 128>}, {transform_indices = @transform_2, window_bounds = array<i64: 1, 8, 128>}]} {
    %c0_i32 = arith.constant 0 : i32
    %0 = arith.cmpi eq, %arg1, %c0_i32 : i32
    %1 = arith.extui %0 : i1 to i32
    %c0_i32_0 = arith.constant 0 : i32
    %2 = arith.cmpi ne, %1, %c0_i32_0 : i32
    scf.if %2 {
      %cst_10 = arith.constant 0.000000e+00 : f32
      %15 = vector.broadcast %cst_10 : f32 to vector<8x128xf32>
      %c0_11 = arith.constant 0 : index
      %c0_12 = arith.constant 0 : index
      %c0_13 = arith.constant 0 : index
      %16 = vector.load %arg4[%c0_11, %c0_12, %c0_13] : memref<1x8x128xf32, #tpu.memory_space<vmem>>, vector<1x8x128xf32>
      %17 = vector.shape_cast %16 : vector<1x8x128xf32> to vector<8x128xf32>
      %18 = vector.shape_cast %15 : vector<8x128xf32> to vector<1x8x128xf32>
      tpu.vector_store %arg4[%c0_11, %c0_12, %c0_13], %18 {strides = array<i32>} : memref<1x8x128xf32, #tpu.memory_space<vmem>>, vector<1x8x128xf32>,
    } else {
    }
    %c0 = arith.constant 0 : index
    %c0_1 = arith.constant 0 : index
    %3 = vector.load %arg2[%c0, %c0_1] : memref<16x128xf32, #tpu.memory_space<vmem>>, vector<16x128xf32>
    %c0_2 = arith.constant 0 : index
    %c0_3 = arith.constant 0 : index
    %4 = vector.load %arg3[%c0_2, %c0_3] : memref<16x128xf32, #tpu.memory_space<vmem>>, vector<16x128xf32>
    %5 = arith.subf %3, %4 : vector<16x128xf32>
    %6 = math.absf %5 : vector<16x128xf32>
    %c0_4 = arith.constant 0 : index
    %c0_5 = arith.constant 0 : index
    %c0_6 = arith.constant 0 : index
    %7 = vector.load %arg4[%c0_4, %c0_5, %c0_6] : memref<1x8x128xf32, #tpu.memory_space<vmem>>, vector<1x8x128xf32>
    %8 = vector.shape_cast %7 : vector<1x8x128xf32> to vector<8x128xf32>
    %9 = vector.shape_cast %6 : vector<16x128xf32> to vector<2x8x128xf32>
    %cst = arith.constant dense<0.000000e+00> : vector<8x128xf32>
    %10 = vector.multi_reduction <add>, %9, %cst [0] : vector<2x8x128xf32> to vector<8x128xf32>
    %11 = arith.addf %8, %10 : vector<8x128xf32>
    %c0_7 = arith.constant 0 : index
    %c0_8 = arith.constant 0 : index
    %c0_9 = arith.constant 0 : index
    %12 = vector.load %arg4[%c0_7, %c0_8, %c0_9] : memref<1x8x128xf32, #tpu.memory_space<vmem>>, vector<1x8x128xf32>
    %13 = vector.shape_cast %12 : vector<1x8x128xf32> to vector<8x128xf32>
    %14 = vector.shape_cast %11 : vector<8x128xf32> to vector<1x8x128xf32>
    tpu.vector_store %arg4[%c0_7, %c0_8, %c0_9], %14 {strides = array<i32>} : memref<1x8x128xf32, #tpu.memory_space<vmem>>, vector<1x8x128xf32>,
    return
  }
  func.func @transform_0(%arg0: i32, %arg1: i32) -> (i32, i32) {
    %c1_i32 = arith.constant 1 : i32
    %0 = arith.muli %arg0, %c1_i32 : i32
    %1 = arith.addi %0, %arg1 : i32
    %c0_i32 = arith.constant 0 : i32
    %c0_i32_0 = arith.constant 0 : i32
    return %1, %c0_i32 : i32, i32
  }
  func.func @transform_1(%arg0: i32, %arg1: i32) -> (i32, i32) {
    %c1_i32 = arith.constant 1 : i32
    %0 = arith.muli %arg0, %c1_i32 : i32
    %1 = arith.addi %0, %arg1 : i32
    %c0_i32 = arith.constant 0 : i32
    %c0_i32_0 = arith.constant 0 : i32
    return %1, %c0_i32 : i32, i32
  }
  func.func @transform_2(%arg0: i32, %arg1: i32) -> (i32, i32, i32) {
    %c0_i32 = arith.constant 0 : i32
    %c0_i32_0 = arith.constant 0 : i32
    %c0_i32_1 = arith.constant 0 : i32
    return %arg0, %c0_i32, %c0_i32_0 : i32, i32, i32
  }
}

</mosaic_0001>

<llo_original>
// kernel: tpu_custom_call.1
$region0: #{tpu_custom_call.1}
  #allocation0 [shape = 'u32[]', space=smem, size = 0x4, offset = 0x4, fixed_abs, tag = 'smem constant byte address 0x4 - core index']
  #allocation1 [shape = 'u32[144,128]{1,0:T(1,128)}', space=vmem, size = 0x12000, scoped, tag = 'internal scratch']
  %s0 = inlined_call_operand.hbm [shape: f32[16,128], index: 0, kind: input, shape index: {}]
  %s1 = inlined_call_operand.hbm [shape: f32[16,128], index: 1, kind: input, shape index: {}]
  %s2 = inlined_call_operand.hbm [shape: f32[1,8,128], index: 2, kind: output, shape index: {}]
  %s3 = sld [smem:[#allocation0]]
  $region30: #{tpu_custom_call.1} parent=0
    _
  %s5 = ssub.s32 1, %s3
  %s6 = scalar_select 0, %s5, %s3
  $region1: #{tpu_custom_call.1} parent=0
    #allocation2 [shape = 'u8[8192]{0}', space=vmem, size = 0x2000, scoped, tag = 'input window, operand 0, single buffered']
    #allocation3 [shape = 's32[1]{0}', space=sflag, size = 0x4, scoped, tag = 'scoped memory for tpu_custom_call.1']
    #allocation4 [shape = 's32[1]{0}', space=sflag, size = 0x4, scoped, tag = 'scoped memory for tpu_custom_call.1']
    #allocation5 [shape = 'u8[8192]{0}', space=vmem, size = 0x2000, scoped, tag = 'input window, operand 1, single buffered']
    #allocation6 [shape = 's32[1]{0}', space=sflag, size = 0x4, scoped, tag = 'scoped memory for tpu_custom_call.1']
    #allocation7 [shape = 'u8[4096]{0}', space=vmem, size = 0x1000, scoped, tag = 'output window, operand 0, single buffered']
    %7 = vsyncpa [#allocation3], 0
    %8 = vsyncpa [#allocation6], 0
    %9 = vsyncpa [#allocation4], 0
    // Predicated region
    $region2: #{tpu_custom_call.1} parent=1 // pred_check
      _
    $region3: #{tpu_custom_call.1} parent=1 // pred_check_branch
      %11 = sbr.rel (0) target = $region5
    $region4: #{tpu_custom_call.1} parent=1 // pred_region
      %s12 = sadd.s32 0, 0
      %s13 = smul.u32 2, %s12
      %s15 = ssub.s32 256, 256
      %16 = vsyncadd [#allocation3], %s15
      %s17 = smul.addr %s13, 128
      %s18 = scalar_lea.hbm %s0, %s17
      %s19 = sshll.u32 [#allocation2], 4
      %s20 = int_to_ptr.vmem [resolvable:$true] %s19
      %25 = dma.hbm_to_vmem [thread:$0]  %s18, 256, %s20, [#allocation3], 128, 128, 8
    $region5: #{tpu_custom_call.1} parent=1 // pred_fallthru
      _
    // Predicated region
    $region6: #{tpu_custom_call.1} parent=1 // pred_check
      _
    $region7: #{tpu_custom_call.1} parent=1 // pred_check_branch
      %27 = sbr.rel (0) target = $region9
    $region8: #{tpu_custom_call.1} parent=1 // pred_region
      %s28 = sadd.s32 0, 0
      %s29 = smul.u32 2, %s28
      %s31 = ssub.s32 256, 256
      %32 = vsyncadd [#allocation6], %s31
      %s33 = smul.addr %s29, 128
      %s34 = scalar_lea.hbm %s1, %s33
      %s35 = sshll.u32 [#allocation5], 4
      %s36 = int_to_ptr.vmem [resolvable:$true] %s35
      %41 = dma.hbm_to_vmem [thread:$0]  %s34, 256, %s36, [#allocation6], 128, 128, 8
    $region9: #{tpu_custom_call.1} parent=1 // pred_fallthru
      _
    // Predicated region
    $region10: #{tpu_custom_call.1} parent=1 // pred_check
      _
    $region11: #{tpu_custom_call.1} parent=1 // pred_check_branch
      %43 = sbr.rel (0) target = $region13
    $region12: #{tpu_custom_call.1} parent=1 // pred_region
      %44 = dma.done [#allocation3], 256
    $region13: #{tpu_custom_call.1} parent=1 // pred_fallthru
      _
    // Predicated region
    $region14: #{tpu_custom_call.1} parent=1 // pred_check
      _
    $region15: #{tpu_custom_call.1} parent=1 // pred_check_branch
      %46 = sbr.rel (0) target = $region17
    $region16: #{tpu_custom_call.1} parent=1 // pred_region
      %47 = dma.done [#allocation6], 256
    $region17: #{tpu_custom_call.1} parent=1 // pred_fallthru
      _
    %s48 = sadd.s32 0, 0
    %s49 = smul.u32 2, %s48
    %s50 = sadd.s32 0, 0
    %s51 = smul.u32 2, %s50
    %p52 = scmp.eq.s32.totalorder 0, 0
    // Predicated region
    $region18: #{tpu_custom_call.1} parent=1 // pred_check
      %p53 = pneg %p52
    $region19: #{tpu_custom_call.1} parent=1 // pred_check_branch
      %55 = sbr.rel (%p53) target = $region21
    $region20: #{tpu_custom_call.1} parent=1 // pred_region
      %56 = vst [vmem:[#allocation7] sm:$0xff] 0.0
    $region21: #{tpu_custom_call.1} parent=1 // pred_fallthru
      _
    %v57 = vld [vmem:[#allocation2] sm:$0xff]
    %v58 = vld [vmem:[#allocation2 + $0x8] sm:$0xff]
    %v59 = vld [vmem:[#allocation5] sm:$0xff]
    %v60 = vld [vmem:[#allocation5 + $0x8] sm:$0xff]
    %v61 = vsub.f32 %v57, %v59
    %v62 = vsub.f32 %v58, %v60
    %v63 = vand.u32 2147483647, %v61
    %v64 = vand.u32 2147483647, %v62
    %v65 = vld [vmem:[#allocation7] sm:$0xff]
    %v66 = vadd.f32 %v63, %v64
    %v67 = vadd.f32 %v65, %v66
    %68 = vst [vmem:[#allocation7] sm:$0xff] %v67
    // Predicated region
    $region22: #{tpu_custom_call.1} parent=1 // pred_check
      _
    $region23: #{tpu_custom_call.1} parent=1 // pred_check_branch
      %70 = sbr.rel (0) target = $region25
    $region24: #{tpu_custom_call.1} parent=1 // pred_region
      %s72 = ssub.s32 128, 128
      %73 = vsyncadd [#allocation4], %s72
      %s75 = sshll.u32 [#allocation7], 4
      %s76 = int_to_ptr.vmem [resolvable:$true] %s75
      %78 = dma.vmem_to_hbm [thread:$0]  %s76, 128, %s2, [#allocation4]
    $region25: #{tpu_custom_call.1} parent=1 // pred_fallthru
      _
    // Predicated region
    $region26: #{tpu_custom_call.1} parent=1 // pred_check
      _
    $region27: #{tpu_custom_call.1} parent=1 // pred_check_branch
      %80 = sbr.rel (0) target = $region29
    $region28: #{tpu_custom_call.1} parent=1 // pred_region
      %81 = dma.done [#allocation4], 128
    $region29: #{tpu_custom_call.1} parent=1 // pred_fallthru
      _
    %82 = vsyncpa [#allocation3], 1
    %83 = vsyncpa [#allocation6], 1
    %84 = vsyncpa [#allocation4], 1

</llo_original>
